<compile_context>
chip_gen: v6e
topology: v6e:2x2x1
jax: 0.10.0
libtpu: 0.0.40
codegen_flags: <defaults>
</compile_context>

<pallas_src>
import jax
import jax.numpy as jnp
from jax import lax
from jax.experimental import pallas as pl
from jax.experimental.pallas import tpu as pltpu

EPS = 1e-5


def _round_up(x, m):
    return (x + m - 1) // m * m


# ---------------------------------------------------------------------------
# Pass 1: conv matmul + per-tile partial BN statistics
# ---------------------------------------------------------------------------
def _conv_stats_kernel(p_ref, w_ref, conv_ref, sum_ref, sqsum_ref):
    """p_ref: (TM, KKC) bf16, w_ref: (KKC, Cout) bf16.
    conv_ref: (TM, Cout) bf16; sum_ref/sqsum_ref: (1, 1, Cout) f32 per-tile partials."""
    acc = jnp.dot(p_ref[...], w_ref[...], preferred_element_type=jnp.float32)
    conv_ref[...] = acc.astype(conv_ref.dtype)
    s = jnp.sum(acc, axis=0, keepdims=True)            # (1, Cout) f32
    ss = jnp.sum(acc * acc, axis=0, keepdims=True)      # (1, Cout) f32
    sum_ref[...] = s[None]
    sqsum_ref[...] = ss[None]


# ---------------------------------------------------------------------------
# Pass 2: elementwise normalize with pre-fused scale/shift (lane-dense layout)
# ---------------------------------------------------------------------------
def _bn_apply_kernel(y_ref, scale_ref, shift_ref, o_ref):
    y = y_ref[...].astype(jnp.float32)
    o_ref[...] = (y * scale_ref[...] + shift_ref[...]).astype(o_ref.dtype)


def _im2col_nhwc(x_nhwc, k, stride, pad):
    """(ki, kj, c)-ordered patches in bf16. Returns (B*Ho*Wo, k*k*Cin), Ho, Wo."""
    b, h, w, cin = x_nhwc.shape
    ho = (h + 2 * pad - k) // stride + 1
    wo = (w + 2 * pad - k) // stride + 1
    xp = jnp.pad(x_nhwc.astype(jnp.bfloat16),
                 ((0, 0), (pad, pad), (pad, pad), (0, 0)))
    cols = []
    for ki in range(k):
        for kj in range(k):
            cols.append(xp[:, ki:ki + stride * (ho - 1) + 1:stride,
                           kj:kj + stride * (wo - 1) + 1:stride, :])
    patches = jnp.stack(cols, axis=3)                # (B, Ho, Wo, k*k, Cin)
    patches = patches.reshape(b * ho * wo, k * k * cin)
    return patches, ho, wo


def conv_norm_pallas(x_nhwc, w_oihw, gamma, beta, *, stride=2, pad=1,
                     out_dtype=jnp.bfloat16, tile_m_target=1024):
    """One ConvNorm layer. x_nhwc: (B,H,W,Cin); w_oihw: (Cout,Cin,K,K)."""
    b = x_nhwc.shape[0]
    cout, cin, k, _ = w_oihw.shape

    patches, ho, wo = _im2col_nhwc(x_nhwc, k, stride, pad)
    m, kkc = patches.shape

    # Lane-dense folding factor for the normalize pass (store width r*cout >= 128).
    r = 128 // cout if (cout < 128 and 128 % cout == 0) else 1
    row_align = max(8, r)

    # TILE_M = 1024 keeps (bf16 patches + bf16 conv tile + f32 acc) double-buffered
    # well under the scoped VMEM defaults on v5e (16 MiB), v6e (32 MiB) and v7x (32 MiB);
    # bump tile_m_target per-generation if desired.
    tile_m = min(tile_m_target, _round_up(m, row_align))
    tile_m = _round_up(tile_m, row_align)
    num_tiles = pl.cdiv(m, tile_m)
    m_pad = num_tiles * tile_m
    if m_pad != m:
        # Zero rows contribute nothing to the partial sums -> stats stay exact.
        patches = jnp.pad(patches, ((0, m_pad - m), (0, 0)))

    # Weight in (ki, kj, c, cout) order to match the patch feature ordering.
    w_mat = jnp.transpose(w_oihw, (2, 3, 1, 0)).reshape(kkc, cout).astype(jnp.bfloat16)

    conv_out, psum, psqsum = pl.pallas_call(
        _conv_stats_kernel,
        out_shape=(
            jax.ShapeDtypeStruct((m_pad, cout), jnp.bfloat16),
            jax.ShapeDtypeStruct((num_tiles, 1, cout), jnp.float32),
            jax.ShapeDtypeStruct((num_tiles, 1, cout), jnp.float32),
        ),
        grid=(num_tiles,),
        in_specs=[
            pl.BlockSpec((tile_m, kkc), lambda i: (i, 0)),
            pl.BlockSpec((kkc, cout), lambda i: (0, 0)),     # grid-invariant weight
        ],
        out_specs=(
            pl.BlockSpec((tile_m, cout), lambda i: (i, 0)),
            pl.BlockSpec((1, 1, cout), lambda i: (i, 0, 0)),
            pl.BlockSpec((1, 1, cout), lambda i: (i, 0, 0)),
        ),
        compiler_params=pltpu.CompilerParams(
            dimension_semantics=("parallel",)),
    )(patches, w_mat)

    # Tiny global reduction (f32) + fused BN scale/shift (train-mode batch stats,
    # biased variance, divide by the TRUE element count m, not m_pad).
    count = jnp.float32(m)
    mean = jnp.sum(psum, axis=(0, 1)) / count
    ex2 = jnp.sum(psqsum, axis=(0, 1)) / count
    var = jnp.maximum(ex2 - mean * mean, 0.0)
    scale = gamma.astype(jnp.float32) * lax.rsqrt(var + EPS)
    shift = beta.astype(jnp.float32) - mean * scale

    # Pass 2: normalize. Fold r consecutive rows into the lane dim so the output
    # store is lane-dense (width r*cout >= 128 when cout < 128).
    lane = r * cout
    m2 = m_pad // r
    tile2 = tile_m // r
    conv_view = conv_out.reshape(m2, lane)
    scale_lane = jnp.tile(scale, r).reshape(1, lane)
    shift_lane = jnp.tile(shift, r).reshape(1, lane)

    out = pl.pallas_call(
        _bn_apply_kernel,
        out_shape=jax.ShapeDtypeStruct((m2, lane), out_dtype),
        grid=(num_tiles,),
        in_specs=[
            pl.BlockSpec((tile2, lane), lambda i: (i, 0)),
            pl.BlockSpec((1, lane), lambda i: (0, 0)),
            pl.BlockSpec((1, lane), lambda i: (0, 0)),
        ],
        out_specs=pl.BlockSpec((tile2, lane), lambda i: (i, 0)),
        compiler_params=pltpu.CompilerParams(
            dimension_semantics=("parallel",)),
    )(conv_view, scale_lane, shift_lane)

    out = out.reshape(m_pad, cout)[:m].reshape(b, ho, wo, cout)
    return out


def init_patch_embedding_params(key, num_layers, encoder_input_dimension=128,
                                kernel_size=3):
    """Deterministic synthetic parameters mirroring the PyTorch __init__ shapes."""
    params = []
    in_dim = 3
    for i in range(num_layers)[::-1]:
        out_dim = encoder_input_dimension // 2 ** i
        key, kw, kg, kb = jax.random.split(key, 4)
        w = 0.1 * jax.random.normal(
            kw, (out_dim, in_dim, kernel_size, kernel_size), jnp.float32)
        gamma = 1.0 + 0.05 * jax.random.normal(kg, (out_dim,), jnp.float32)
        beta = 0.05 * jax.random.normal(kb, (out_dim,), jnp.float32)
        params.append((w, gamma, beta))
        in_dim = out_dim
    return params


@jax.jit
def patch_embedding_forward(x_nchw, params):
    """Forward of PatchEmbedding. Input/output in NCHW (PyTorch convention)."""
    x = jnp.transpose(x_nchw, (0, 2, 3, 1))  # NCHW -> NHWC
    n = len(params)
    for idx, (w, gamma, beta) in enumerate(params):
        out_dtype = jnp.float32 if idx == n - 1 else jnp.bfloat16
        x = conv_norm_pallas(x, w, gamma, beta, stride=2, pad=1, out_dtype=out_dtype)
    return jnp.transpose(x, (0, 3, 1, 2))    # NHWC -> NCHW


def _reference_forward(x_nchw, params):
    """Pure-JAX reference (lax.conv + train-mode BN) mirroring the kernel's
    bf16 MXU operands / bf16 intermediates, with BN statistics in f32."""
    x = x_nchw
    n = len(params)
    for idx, (w, gamma, beta) in enumerate(params):
        xb = x.astype(jnp.bfloat16)
        wb = w.astype(jnp.bfloat16)
        y = lax.conv_general_dilated(
            xb, wb, window_strides=(2, 2), padding=[(1, 1), (1, 1)],
            dimension_numbers=("NCHW", "OIHW", "NCHW"),
            preferred_element_type=jnp.float32)
        mean = y.mean(axis=(0, 2, 3))
        ex2 = (y * y).mean(axis=(0, 2, 3))
        var = jnp.maximum(ex2 - mean * mean, 0.0)
        scale = gamma * lax.rsqrt(var + EPS)
        shift = beta - mean * scale
        # Mirror the kernel's bf16 conv intermediate between its two passes.
        y_q = y.astype(jnp.bfloat16).astype(jnp.float32)
        y = y_q * scale.reshape(1, -1, 1, 1) + shift.reshape(1, -1, 1, 1)
        x = y.astype(jnp.float32) if idx == n - 1 else y.astype(jnp.bfloat16)
    return x


if __name__ == "__main__":
    key = jax.random.PRNGKey(0)
    k_x, k_p = jax.random.split(key)

    # Small config: num_layers=2, encoder_input_dimension=32
    #   channels: 3 -> 16 -> 32, spatial: 16 -> 8 -> 4
    num_layers = 2
    enc_dim = 32
    x = jax.random.normal(k_x, (2, 3, 16, 16), jnp.float32)  # NCHW like PyTorch
    params = init_patch_embedding_params(k_p, num_layers, enc_dim)

    out = patch_embedding_forward(x, params)
    out = jax.block_until_ready(out)
    assert out.shape == (2, enc_dim, 4, 4), out.shape

    ref = jax.block_until_ready(_reference_forward(x, params))
    if not jnp.allclose(out, ref, rtol=1e-2, atol=1e-2):
        max_err = jnp.max(jnp.abs(out - ref))
        raise AssertionError(f"Pallas output does not match reference (max abs err {max_err})")

    print("KERNEL_OK")
</pallas_src>

<mosaic_0001>
module attributes {stable_mosaic.version = 11 : i64} {
  func.func @_conv_stats_kernel(%arg0: i32, %arg1: memref<128x27xbf16, #tpu.memory_space<vmem>>, %arg2: memref<27x16xbf16, #tpu.memory_space<vmem>>, %arg3: memref<128x16xbf16, #tpu.memory_space<vmem>>, %arg4: memref<1x1x16xf32, #tpu.memory_space<vmem>>, %arg5: memref<1x1x16xf32, #tpu.memory_space<vmem>>) attributes {dimension_semantics = [#tpu.dimension_semantics<parallel>], iteration_bounds = array<i64: 1>, scalar_prefetch = 0 : i64, scratch_operands = 0 : i64, tpu.core_type = #tpu.core_type<tc>, window_params = [{transform_indices = @transform_0, window_bounds = array<i64: 128, 27>}, {pipeline_mode = #tpu.pipeline_mode<synchronous>, transform_indices = @transform_1, window_bounds = array<i64: 27, 16>}, {transform_indices = @transform_2, window_bounds = array<i64: 128, 16>}, {transform_indices = @transform_3, window_bounds = array<i64: 1, 1, 16>}, {transform_indices = @transform_4, window_bounds = array<i64: 1, 1, 16>}]} {
    %c0 = arith.constant 0 : index
    %c0_0 = arith.constant 0 : index
    %0 = vector.load %arg1[%c0, %c0_0] : memref<128x27xbf16, #tpu.memory_space<vmem>>, vector<128x27xbf16>
    %c0_1 = arith.constant 0 : index
    %c0_2 = arith.constant 0 : index
    %1 = vector.load %arg2[%c0_1, %c0_2] : memref<27x16xbf16, #tpu.memory_space<vmem>>, vector<27x16xbf16>
    %cst = arith.constant dense<0.000000e+00> : vector<128x16xf32>
    %2 = tpu.matmul %0, %1, %cst {dimension_numbers = #tpu.dot_dimension_numbers<[1], [0], [0], [1], [0, 0, 1, 1], [], []>} : vector<128x27xbf16>, vector<27x16xbf16>, vector<128x16xf32> -> vector<128x16xf32>
    %3 = arith.truncf %2 : vector<128x16xf32> to vector<128x16xbf16>
    %c0_3 = arith.constant 0 : index
    %c0_4 = arith.constant 0 : index
    %4 = vector.load %arg3[%c0_3, %c0_4] : memref<128x16xbf16, #tpu.memory_space<vmem>>, vector<128x16xbf16>
    tpu.vector_store %arg3[%c0_3, %c0_4], %3 {strides = array<i32>} : memref<128x16xbf16, #tpu.memory_space<vmem>>, vector<128x16xbf16>,
    %cst_5 = arith.constant dense<0.000000e+00> : vector<16xf32>
    %5 = vector.multi_reduction <add>, %2, %cst_5 [0] : vector<128x16xf32> to vector<16xf32>
    %6 = vector.shape_cast %5 : vector<16xf32> to vector<1x16xf32>
    %7 = arith.mulf %2, %2 : vector<128x16xf32>
    %cst_6 = arith.constant dense<0.000000e+00> : vector<16xf32>
    %8 = vector.multi_reduction <add>, %7, %cst_6 [0] : vector<128x16xf32> to vector<16xf32>
    %9 = vector.shape_cast %8 : vector<16xf32> to vector<1x16xf32>
    %10 = vector.shape_cast %6 : vector<1x16xf32> to vector<1x1x16xf32>
    %c0_7 = arith.constant 0 : index
    %c0_8 = arith.constant 0 : index
    %c0_9 = arith.constant 0 : index
    %11 = vector.load %arg4[%c0_7, %c0_8, %c0_9] : memref<1x1x16xf32, #tpu.memory_space<vmem>>, vector<1x1x16xf32>
    tpu.vector_store %arg4[%c0_7, %c0_8, %c0_9], %10 {strides = array<i32>} : memref<1x1x16xf32, #tpu.memory_space<vmem>>, vector<1x1x16xf32>,
    %12 = vector.shape_cast %9 : vector<1x16xf32> to vector<1x1x16xf32>
    %c0_10 = arith.constant 0 : index
    %c0_11 = arith.constant 0 : index
    %c0_12 = arith.constant 0 : index
    %13 = vector.load %arg5[%c0_10, %c0_11, %c0_12] : memref<1x1x16xf32, #tpu.memory_space<vmem>>, vector<1x1x16xf32>
    tpu.vector_store %arg5[%c0_10, %c0_11, %c0_12], %12 {strides = array<i32>} : memref<1x1x16xf32, #tpu.memory_space<vmem>>, vector<1x1x16xf32>,
    return
  }
  func.func @transform_0(%arg0: i32) -> (i32, i32) {
    %c0_i32 = arith.constant 0 : i32
    %c0_i32_0 = arith.constant 0 : i32
    return %arg0, %c0_i32 : i32, i32
  }
  func.func @transform_1(%arg0: i32) -> (i32, i32) {
    %c0_i32 = arith.constant 0 : i32
    %c0_i32_0 = arith.constant 0 : i32
    %c0_i32_1 = arith.constant 0 : i32
    return %c0_i32, %c0_i32_0 : i32, i32
  }
  func.func @transform_2(%arg0: i32) -> (i32, i32) {
    %c0_i32 = arith.constant 0 : i32
    %c0_i32_0 = arith.constant 0 : i32
    return %arg0, %c0_i32 : i32, i32
  }
  func.func @transform_3(%arg0: i32) -> (i32, i32, i32) {
    %c0_i32 = arith.constant 0 : i32
    %c0_i32_0 = arith.constant 0 : i32
    %c0_i32_1 = arith.constant 0 : i32
    return %arg0, %c0_i32, %c0_i32_0 : i32, i32, i32
  }
  func.func @transform_4(%arg0: i32) -> (i32, i32, i32) {
    %c0_i32 = arith.constant 0 : i32
    %c0_i32_0 = arith.constant 0 : i32
    %c0_i32_1 = arith.constant 0 : i32
    return %arg0, %c0_i32, %c0_i32_0 : i32, i32, i32
  }
}

module attributes {stable_mosaic.version = 11 : i64} {
  func.func @_bn_apply_kernel(%arg0: i32, %arg1: memref<16x128xbf16, #tpu.memory_space<vmem>>, %arg2: memref<1x128xf32, #tpu.memory_space<vmem>>, %arg3: memref<1x128xf32, #tpu.memory_space<vmem>>, %arg4: memref<16x128xbf16, #tpu.memory_space<vmem>>) attributes {dimension_semantics = [#tpu.dimension_semantics<parallel>], iteration_bounds = array<i64: 1>, scalar_prefetch = 0 : i64, scratch_operands = 0 : i64, tpu.core_type = #tpu.core_type<tc>, window_params = [{transform_indices = @transform_0, window_bounds = array<i64: 16, 128>}, {pipeline_mode = #tpu.pipeline_mode<synchronous>, transform_indices = @transform_1, window_bounds = array<i64: 1, 128>}, {pipeline_mode = #tpu.pipeline_mode<synchronous>, transform_indices = @transform_2, window_bounds = array<i64: 1, 128>}, {transform_indices = @transform_3, window_bounds = array<i64: 16, 128>}]} {
    %c0 = arith.constant 0 : index
    %c0_0 = arith.constant 0 : index
    %0 = vector.load %arg1[%c0, %c0_0] : memref<16x128xbf16, #tpu.memory_space<vmem>>, vector<16x128xbf16>
    %1 = arith.extf %0 : vector<16x128xbf16> to vector<16x128xf32>
    %c0_1 = arith.constant 0 : index
    %c0_2 = arith.constant 0 : index
    %2 = vector.load %arg2[%c0_1, %c0_2] : memref<1x128xf32, #tpu.memory_space<vmem>>, vector<1x128xf32>
    %3 = vector.broadcast %2 : vector<1x128xf32> to vector<16x128xf32>
    %4 = arith.mulf %1, %3 : vector<16x128xf32>
    %c0_3 = arith.constant 0 : index
    %c0_4 = arith.constant 0 : index
    %5 = vector.load %arg3[%c0_3, %c0_4] : memref<1x128xf32, #tpu.memory_space<vmem>>, vector<1x128xf32>
    %6 = vector.broadcast %5 : vector<1x128xf32> to vector<16x128xf32>
    %7 = arith.addf %4, %6 : vector<16x128xf32>
    %8 = arith.truncf %7 : vector<16x128xf32> to vector<16x128xbf16>
    %c0_5 = arith.constant 0 : index
    %c0_6 = arith.constant 0 : index
    %9 = vector.load %arg4[%c0_5, %c0_6] : memref<16x128xbf16, #tpu.memory_space<vmem>>, vector<16x128xbf16>
    tpu.vector_store %arg4[%c0_5, %c0_6], %8 {strides = array<i32>} : memref<16x128xbf16, #tpu.memory_space<vmem>>, vector<16x128xbf16>,
    return
  }
  func.func @transform_0(%arg0: i32) -> (i32, i32) {
    %c0_i32 = arith.constant 0 : i32
    %c0_i32_0 = arith.constant 0 : i32
    return %arg0, %c0_i32 : i32, i32
  }
  func.func @transform_1(%arg0: i32) -> (i32, i32) {
    %c0_i32 = arith.constant 0 : i32
    %c0_i32_0 = arith.constant 0 : i32
    %c0_i32_1 = arith.constant 0 : i32
    return %c0_i32, %c0_i32_0 : i32, i32
  }
  func.func @transform_2(%arg0: i32) -> (i32, i32) {
    %c0_i32 = arith.constant 0 : i32
    %c0_i32_0 = arith.constant 0 : i32
    %c0_i32_1 = arith.constant 0 : i32
    return %c0_i32, %c0_i32_0 : i32, i32
  }
  func.func @transform_3(%arg0: i32) -> (i32, i32) {
    %c0_i32 = arith.constant 0 : i32
    %c0_i32_0 = arith.constant 0 : i32
    return %arg0, %c0_i32 : i32, i32
  }
}

module attributes {stable_mosaic.version = 11 : i64} {
  func.func @_conv_stats_kernel(%arg0: i32, %arg1: memref<32x144xbf16, #tpu.memory_space<vmem>>, %arg2: memref<144x32xbf16, #tpu.memory_space<vmem>>, %arg3: memref<32x32xbf16, #tpu.memory_space<vmem>>, %arg4: memref<1x1x32xf32, #tpu.memory_space<vmem>>, %arg5: memref<1x1x32xf32, #tpu.memory_space<vmem>>) attributes {dimension_semantics = [#tpu.dimension_semantics<parallel>], iteration_bounds = array<i64: 1>, scalar_prefetch = 0 : i64, scratch_operands = 0 : i64, tpu.core_type = #tpu.core_type<tc>, window_params = [{transform_indices = @transform_0, window_bounds = array<i64: 32, 144>}, {pipeline_mode = #tpu.pipeline_mode<synchronous>, transform_indices = @transform_1, window_bounds = array<i64: 144, 32>}, {transform_indices = @transform_2, window_bounds = array<i64: 32, 32>}, {transform_indices = @transform_3, window_bounds = array<i64: 1, 1, 32>}, {transform_indices = @transform_4, window_bounds = array<i64: 1, 1, 32>}]} {
    %c0 = arith.constant 0 : index
    %c0_0 = arith.constant 0 : index
    %0 = vector.load %arg1[%c0, %c0_0] : memref<32x144xbf16, #tpu.memory_space<vmem>>, vector<32x144xbf16>
    %c0_1 = arith.constant 0 : index
    %c0_2 = arith.constant 0 : index
    %1 = vector.load %arg2[%c0_1, %c0_2] : memref<144x32xbf16, #tpu.memory_space<vmem>>, vector<144x32xbf16>
    %cst = arith.constant dense<0.000000e+00> : vector<32x32xf32>
    %2 = tpu.matmul %0, %1, %cst {dimension_numbers = #tpu.dot_dimension_numbers<[1], [0], [0], [1], [0, 0, 1, 1], [], []>} : vector<32x144xbf16>, vector<144x32xbf16>, vector<32x32xf32> -> vector<32x32xf32>
    %3 = arith.truncf %2 : vector<32x32xf32> to vector<32x32xbf16>
    %c0_3 = arith.constant 0 : index
    %c0_4 = arith.constant 0 : index
    %4 = vector.load %arg3[%c0_3, %c0_4] : memref<32x32xbf16, #tpu.memory_space<vmem>>, vector<32x32xbf16>
    tpu.vector_store %arg3[%c0_3, %c0_4], %3 {strides = array<i32>} : memref<32x32xbf16, #tpu.memory_space<vmem>>, vector<32x32xbf16>,
    %cst_5 = arith.constant dense<0.000000e+00> : vector<32xf32>
    %5 = vector.multi_reduction <add>, %2, %cst_5 [0] : vector<32x32xf32> to vector<32xf32>
    %6 = vector.shape_cast %5 : vector<32xf32> to vector<1x32xf32>
    %7 = arith.mulf %2, %2 : vector<32x32xf32>
    %cst_6 = arith.constant dense<0.000000e+00> : vector<32xf32>
    %8 = vector.multi_reduction <add>, %7, %cst_6 [0] : vector<32x32xf32> to vector<32xf32>
    %9 = vector.shape_cast %8 : vector<32xf32> to vector<1x32xf32>
    %10 = vector.shape_cast %6 : vector<1x32xf32> to vector<1x1x32xf32>
    %c0_7 = arith.constant 0 : index
    %c0_8 = arith.constant 0 : index
    %c0_9 = arith.constant 0 : index
    %11 = vector.load %arg4[%c0_7, %c0_8, %c0_9] : memref<1x1x32xf32, #tpu.memory_space<vmem>>, vector<1x1x32xf32>
    tpu.vector_store %arg4[%c0_7, %c0_8, %c0_9], %10 {strides = array<i32>} : memref<1x1x32xf32, #tpu.memory_space<vmem>>, vector<1x1x32xf32>,
    %12 = vector.shape_cast %9 : vector<1x32xf32> to vector<1x1x32xf32>
    %c0_10 = arith.constant 0 : index
    %c0_11 = arith.constant 0 : index
    %c0_12 = arith.constant 0 : index
    %13 = vector.load %arg5[%c0_10, %c0_11, %c0_12] : memref<1x1x32xf32, #tpu.memory_space<vmem>>, vector<1x1x32xf32>
    tpu.vector_store %arg5[%c0_10, %c0_11, %c0_12], %12 {strides = array<i32>} : memref<1x1x32xf32, #tpu.memory_space<vmem>>, vector<1x1x32xf32>,
    return
  }
  func.func @transform_0(%arg0: i32) -> (i32, i32) {
    %c0_i32 = arith.constant 0 : i32
    %c0_i32_0 = arith.constant 0 : i32
    return %arg0, %c0_i32 : i32, i32
  }
  func.func @transform_1(%arg0: i32) -> (i32, i32) {
    %c0_i32 = arith.constant 0 : i32
    %c0_i32_0 = arith.constant 0 : i32
    %c0_i32_1 = arith.constant 0 : i32
    return %c0_i32, %c0_i32_0 : i32, i32
  }
  func.func @transform_2(%arg0: i32) -> (i32, i32) {
    %c0_i32 = arith.constant 0 : i32
    %c0_i32_0 = arith.constant 0 : i32
    return %arg0, %c0_i32 : i32, i32
  }
  func.func @transform_3(%arg0: i32) -> (i32, i32, i32) {
    %c0_i32 = arith.constant 0 : i32
    %c0_i32_0 = arith.constant 0 : i32
    %c0_i32_1 = arith.constant 0 : i32
    return %arg0, %c0_i32, %c0_i32_0 : i32, i32, i32
  }
  func.func @transform_4(%arg0: i32) -> (i32, i32, i32) {
    %c0_i32 = arith.constant 0 : i32
    %c0_i32_0 = arith.constant 0 : i32
    %c0_i32_1 = arith.constant 0 : i32
    return %arg0, %c0_i32, %c0_i32_0 : i32, i32, i32
  }
}

module attributes {stable_mosaic.version = 11 : i64} {
  func.func @_bn_apply_kernel(%arg0: i32, %arg1: memref<8x128xbf16, #tpu.memory_space<vmem>>, %arg2: memref<1x128xf32, #tpu.memory_space<vmem>>, %arg3: memref<1x128xf32, #tpu.memory_space<vmem>>, %arg4: memref<8x128xf32, #tpu.memory_space<vmem>>) attributes {dimension_semantics = [#tpu.dimension_semantics<parallel>], iteration_bounds = array<i64: 1>, scalar_prefetch = 0 : i64, scratch_operands = 0 : i64, tpu.core_type = #tpu.core_type<tc>, window_params = [{transform_indices = @transform_0, window_bounds = array<i64: 8, 128>}, {pipeline_mode = #tpu.pipeline_mode<synchronous>, transform_indices = @transform_1, window_bounds = array<i64: 1, 128>}, {pipeline_mode = #tpu.pipeline_mode<synchronous>, transform_indices = @transform_2, window_bounds = array<i64: 1, 128>}, {transform_indices = @transform_3, window_bounds = array<i64: 8, 128>}]} {
    %c0 = arith.constant 0 : index
    %c0_0 = arith.constant 0 : index
    %0 = vector.load %arg1[%c0, %c0_0] : memref<8x128xbf16, #tpu.memory_space<vmem>>, vector<8x128xbf16>
    %1 = arith.extf %0 : vector<8x128xbf16> to vector<8x128xf32>
    %c0_1 = arith.constant 0 : index
    %c0_2 = arith.constant 0 : index
    %2 = vector.load %arg2[%c0_1, %c0_2] : memref<1x128xf32, #tpu.memory_space<vmem>>, vector<1x128xf32>
    %3 = vector.broadcast %2 : vector<1x128xf32> to vector<8x128xf32>
    %4 = arith.mulf %1, %3 : vector<8x128xf32>
    %c0_3 = arith.constant 0 : index
    %c0_4 = arith.constant 0 : index
    %5 = vector.load %arg3[%c0_3, %c0_4] : memref<1x128xf32, #tpu.memory_space<vmem>>, vector<1x128xf32>
    %6 = vector.broadcast %5 : vector<1x128xf32> to vector<8x128xf32>
    %7 = arith.addf %4, %6 : vector<8x128xf32>
    %c0_5 = arith.constant 0 : index
    %c0_6 = arith.constant 0 : index
    %8 = vector.load %arg4[%c0_5, %c0_6] : memref<8x128xf32, #tpu.memory_space<vmem>>, vector<8x128xf32>
    tpu.vector_store %arg4[%c0_5, %c0_6], %7 {strides = array<i32>} : memref<8x128xf32, #tpu.memory_space<vmem>>, vector<8x128xf32>,
    return
  }
  func.func @transform_0(%arg0: i32) -> (i32, i32) {
    %c0_i32 = arith.constant 0 : i32
    %c0_i32_0 = arith.constant 0 : i32
    return %arg0, %c0_i32 : i32, i32
  }
  func.func @transform_1(%arg0: i32) -> (i32, i32) {
    %c0_i32 = arith.constant 0 : i32
    %c0_i32_0 = arith.constant 0 : i32
    %c0_i32_1 = arith.constant 0 : i32
    return %c0_i32, %c0_i32_0 : i32, i32
  }
  func.func @transform_2(%arg0: i32) -> (i32, i32) {
    %c0_i32 = arith.constant 0 : i32
    %c0_i32_0 = arith.constant 0 : i32
    %c0_i32_1 = arith.constant 0 : i32
    return %c0_i32, %c0_i32_0 : i32, i32
  }
  func.func @transform_3(%arg0: i32) -> (i32, i32) {
    %c0_i32 = arith.constant 0 : i32
    %c0_i32_0 = arith.constant 0 : i32
    return %arg0, %c0_i32 : i32, i32
  }
}

</mosaic_0001>

<llo_original>
// kernel: tile.23
$region0: #{tile.23}
  #allocation0 [shape = 's32[1]{0}', space=sflag, size = 0x4, scoped, tag = 'scoped memory for tile.23']
  %s0 = inlined_call_operand.vmem [shape: f32[16], index: 0, kind: input, shape index: {}]
  %s1 = inlined_call_operand.vmem [shape: f32[8,16], index: 1, kind: output, shape index: {}]
  // Predicated region
  $region2: #{tile.23} parent=0 // pred_check
    _
  $region3: #{tile.23} parent=0 // pred_check_branch
    %3 = sbr.rel (0) target = $region5
  $region4: #{tile.23} parent=0 // pred_region
    _
  $region5: #{tile.23} parent=0 // pred_fallthru
    _
  %v4 = vld [vmem:[%s0] ss:$0 sm:$0xff]
  %5 = vst [vmem:[%s1] sm:$0xff] %v4

// kernel: tile.24
$region0: #{tile.24}
  %s0 = inlined_call_operand.vmem [shape: f32[8,16], index: 0, kind: input, shape index: {}]
  %s1 = inlined_call_operand.vmem [shape: f32[1,128], index: 1, kind: output, shape index: {}]
  $region1: #{tile.24} parent=0
    #allocation0 [shape = 'u8[4096]{0}', space=vmem, size = 0x1000, scoped, tag = 'scoped mem for output reshape']
    %v2 = vld [vmem:[%s0] sm:$0x1]
    %vm3 = vcmask 130048
    %4 = vst.msk [vmem:[#allocation0] sm:$0x1] %vm3, %v2
    %s5 = scalar_lea.vmem %s0, 7
    %v6 = vld [vmem:[%s5] sm:$0x1]
    %7 = vrot.lane.b32.xlu0 %v6, 112
    %v8 = vpop.permute.xlu0 %7
    %vm9 = vcmask 1048448
    %10 = vst.msk [vmem:[#allocation0] sm:$0x1] %vm9, %v8
    %s11 = scalar_lea.vmem %s0, 6
    %v12 = vld [vmem:[%s11] sm:$0x1]
    %13 = vrot.lane.b32.xlu0 %v12, 96
    %v14 = vpop.permute.xlu0 %13
    %vm15 = vcmask 917248
    %16 = vst.msk [vmem:[#allocation0] sm:$0x1] %vm15, %v14
    %s17 = scalar_lea.vmem %s0, 5
    %v18 = vld [vmem:[%s17] sm:$0x1]
    %19 = vrot.lane.b32.xlu0 %v18, 80
    %v20 = vpop.permute.xlu0 %19
    %vm21 = vcmask 786048
    %22 = vst.msk [vmem:[#allocation0] sm:$0x1] %vm21, %v20
    %s23 = scalar_lea.vmem %s0, 4
    %v24 = vld [vmem:[%s23] sm:$0x1]
    %25 = vrot.lane.b32.xlu0 %v24, 64
    %v26 = vpop.permute.xlu0 %25
    %vm27 = vcmask 654848
    %28 = vst.msk [vmem:[#allocation0] sm:$0x1] %vm27, %v26
    %s29 = scalar_lea.vmem %s0, 3
    %v30 = vld [vmem:[%s29] sm:$0x1]
    %31 = vrot.lane.b32.xlu0 %v30, 48
    %v32 = vpop.permute.xlu0 %31
    %vm33 = vcmask 523648
    %34 = vst.msk [vmem:[#allocation0] sm:$0x1] %vm33, %v32
    %s35 = scalar_lea.vmem %s0, 2
    %v36 = vld [vmem:[%s35] sm:$0x1]
    %37 = vrot.lane.b32.xlu0 %v36, 32
    %v38 = vpop.permute.xlu0 %37
    %vm39 = vcmask 392448
    %40 = vst.msk [vmem:[#allocation0] sm:$0x1] %vm39, %v38
    %s41 = scalar_lea.vmem %s0, 1
    %v42 = vld [vmem:[%s41] sm:$0x1]
    %43 = vrot.lane.b32.xlu0 %v42, 16
    %v44 = vpop.permute.xlu0 %43
    %vm45 = vcmask 261248
    %46 = vst.msk [vmem:[#allocation0] sm:$0x1] %vm45, %v44
    %s48 = sshll.u32 1, 1
    %s49 = ssub.s32 %s48, 1
    %v51 = vld [vmem:[#allocation0] sm:%s49]
    %s52 = sshll.u32 1, 1
    %s53 = ssub.s32 %s52, 1
    %54 = vst [vmem:[%s1] sm:%s53] %v51

// kernel: patch_embedding_forward.5
$region0: #{patch_embedding_forward.5}
  #allocation0 [shape = 'u32[]', space=smem, size = 0x4, offset = 0x4, fixed_abs, tag = 'smem constant byte address 0x4 - core index']
  #allocation1 [shape = 'u32[144,128]{1,0:T(1,128)}', space=vmem, size = 0x12000, scoped, tag = 'internal scratch']
  %s0 = inlined_call_operand.vmem [shape: bf16[16,128], index: 0, kind: input, shape index: {}]
  %s1 = inlined_call_operand.vmem [shape: f32[1,128], index: 1, kind: input, shape index: {}]
  %s2 = inlined_call_operand.vmem [shape: f32[1,128], index: 2, kind: input, shape index: {}]
  %s3 = inlined_call_operand.vmem [shape: bf16[16,128], index: 3, kind: output, shape index: {}]
  %s4 = sld [smem:[#allocation0]]
  $region22: #{patch_embedding_forward.5} parent=0
    _
  %s6 = ssub.s32 1, %s4
  %s7 = scalar_select 0, %s6, %s4
  // Predicated region
  $region2: #{patch_embedding_forward.5} parent=0 // pred_check
    _
  $region3: #{patch_embedding_forward.5} parent=0 // pred_check_branch
    %9 = sbr.rel (0) target = $region5
  $region4: #{patch_embedding_forward.5} parent=0 // pred_region
    _
  $region5: #{patch_embedding_forward.5} parent=0 // pred_fallthru
    _
  // Predicated region
  $region6: #{patch_embedding_forward.5} parent=0 // pred_check
    _
  $region7: #{patch_embedding_forward.5} parent=0 // pred_check_branch
    %11 = sbr.rel (0) target = $region9
  $region8: #{patch_embedding_forward.5} parent=0 // pred_region
    _
  $region9: #{patch_embedding_forward.5} parent=0 // pred_fallthru
    _
  // Predicated region
  $region10: #{patch_embedding_forward.5} parent=0 // pred_check
    _
  $region11: #{patch_embedding_forward.5} parent=0 // pred_check_branch
    %13 = sbr.rel (0) target = $region13
  $region12: #{patch_embedding_forward.5} parent=0 // pred_region
    _
  $region13: #{patch_embedding_forward.5} parent=0 // pred_fallthru
    _
  %v14 = vld [vmem:[%s0] sm:$0xf]
  %v15 = vld [vmem:[%s0 + $0x4] sm:$0xf]
  %v16 = vunpack.c.l.bf16 %v14
  %v17 = vunpack.c.l.bf16 %v15
  %v18 = vld [vmem:[%s1] sm:$0x1]
  %v20 = vlaneseq
  %v21 = vshrl.u32 %v20, 7
  %v22 = vsub.s32 0, %v21
  %v23 = vrot.slane %v18, %v22
  %v25 = vmul.f32 %v16, %v23
  %v26 = vmul.f32 %v17, %v23
  %v27 = vld [vmem:[%s2] sm:$0x1]
  %v29 = vlaneseq
  %v30 = vshrl.u32 %v29, 7
  %v31 = vsub.s32 0, %v30
  %v32 = vrot.slane %v27, %v31
  %v34 = vadd.f32 %v25, %v32
  %v35 = vadd.f32 %v26, %v32
  %v36 = vpack.c.bf16 %v35, %v34
  %v38 = vunpack.c.l.b16 %v36
  %v39 = vunpack.c.h.b16 %v36
  %v40 = vpack.c.b16 %v38, %v38
  %v41 = vpack.c.b16 %v39, %v39
  %44 = vst [vmem:[%s3] sm:$0xf] %v40
  %45 = vst [vmem:[%s3 + $0x4] sm:$0xf] %v41
  // Predicated region
  $region14: #{patch_embedding_forward.5} parent=0 // pred_check
    _
  $region15: #{patch_embedding_forward.5} parent=0 // pred_check_branch
    %47 = sbr.rel (0) target = $region17
  $region16: #{patch_embedding_forward.5} parent=0 // pred_region
    _
  $region17: #{patch_embedding_forward.5} parent=0 // pred_fallthru
    _
  // Predicated region
  $region18: #{patch_embedding_forward.5} parent=0 // pred_check
    _
  $region19: #{patch_embedding_forward.5} parent=0 // pred_check_branch
    %49 = sbr.rel (0) target = $region21
  $region20: #{patch_embedding_forward.5} parent=0 // pred_region
    _
  $region21: #{patch_embedding_forward.5} parent=0 // pred_fallthru
    _

// kernel: patch_embedding_forward.4
$region0: #{patch_embedding_forward.4}
  #allocation0 [shape = 'u32[]', space=smem, size = 0x4, offset = 0x4, fixed_abs, tag = 'smem constant byte address 0x4 - core index']
  #allocation1 [shape = 'u32[144,128]{1,0:T(1,128)}', space=vmem, size = 0x12000, scoped, tag = 'internal scratch']
  %s0 = inlined_call_operand.vmem [shape: bf16[128,27], index: 0, kind: input, shape index: {}]
  %s1 = inlined_call_operand.vmem [shape: bf16[27,16], index: 1, kind: input, shape index: {}]
  %s2 = inlined_call_operand.vmem [shape: bf16[128,16], index: 2, kind: output, shape index: {0}]
  %s3 = inlined_call_operand.vmem [shape: f32[1,1,16], index: 3, kind: output, shape index: {1}]
  %s4 = inlined_call_operand.vmem [shape: f32[1,1,16], index: 4, kind: output, shape index: {2}]
  %5 = xla_tuple %s2, %s3, %s4
  %s6 = sld [smem:[#allocation0]]
  $region34: #{patch_embedding_forward.4} parent=0
    _
  %s8 = ssub.s32 1, %s6
  %s9 = scalar_select 0, %s8, %s6
  // Predicated region
  $region2: #{patch_embedding_forward.4} parent=0 // pred_check
    _
  $region3: #{patch_embedding_forward.4} parent=0 // pred_check_branch
    %11 = sbr.rel (0) target = $region5
  $region4: #{patch_embedding_forward.4} parent=0 // pred_region
    _
  $region5: #{patch_embedding_forward.4} parent=0 // pred_fallthru
    _
  // Predicated region
  $region6: #{patch_embedding_forward.4} parent=0 // pred_check
    _
  $region7: #{patch_embedding_forward.4} parent=0 // pred_check_branch
    %13 = sbr.rel (0) target = $region9
  $region8: #{patch_embedding_forward.4} parent=0 // pred_region
    _
  $region9: #{patch_embedding_forward.4} parent=0 // pred_fallthru
    _
  %v15 = vld [vmem:[%s0] sm:$0xf]
  %v16 = vld [vmem:[%s0 + $0x4] sm:$0xf]
  %v17 = vld [vmem:[%s0 + $0x8] sm:$0xf]
  %v18 = vld [vmem:[%s0 + $0xc] sm:$0xf]
  %v19 = vld [vmem:[%s0 + $0x10] sm:$0xf]
  %v20 = vld [vmem:[%s0 + $0x14] sm:$0xf]
  %v21 = vld [vmem:[%s0 + $0x18] sm:$0xf]
  %v22 = vld [vmem:[%s0 + $0x1c] sm:$0xf]
  %v23 = vld [vmem:[%s0 + $0x20] sm:$0xf]
  %v24 = vld [vmem:[%s0 + $0x24] sm:$0xf]
  %v25 = vld [vmem:[%s0 + $0x28] sm:$0xf]
  %v26 = vld [vmem:[%s0 + $0x2c] sm:$0xf]
  %v27 = vld [vmem:[%s0 + $0x30] sm:$0xf]
  %v28 = vld [vmem:[%s0 + $0x34] sm:$0xf]
  %v29 = vld [vmem:[%s0 + $0x38] sm:$0xf]
  %v30 = vld [vmem:[%s0 + $0x3c] sm:$0xf]
  %v31 = vld [vmem:[%s1] sm:$0xf]
  %v32 = vld [vmem:[%s1 + $0x4] sm:$0xf]
  %v33 = vld [vmem:[%s1 + $0x8] sm:$0xf]
  %v34 = vld [vmem:[%s1 + $0xc] sm:$0x3]
  %v51 = vunpack.c.l.b16 %v15
  %v52 = vunpack.c.l.b16 %v16
  %v53 = vunpack.c.l.b16 %v17
  %v54 = vunpack.c.l.b16 %v18
  %v55 = vunpack.c.l.b16 %v19
  %v56 = vunpack.c.l.b16 %v20
  %v57 = vunpack.c.l.b16 %v21
  %v58 = vunpack.c.l.b16 %v22
  %v59 = vunpack.c.l.b16 %v23
  %v60 = vunpack.c.l.b16 %v24
  %v61 = vunpack.c.l.b16 %v25
  %v62 = vunpack.c.l.b16 %v26
  %v63 = vunpack.c.l.b16 %v27
  %v64 = vunpack.c.l.b16 %v28
  %v65 = vunpack.c.l.b16 %v29
  %v66 = vunpack.c.l.b16 %v30
  %v67 = vpack.c.b16 %v52, %v51
  %v68 = vpack.c.b16 %v54, %v53
  %v69 = vpack.c.b16 %v56, %v55
  %v70 = vpack.c.b16 %v58, %v57
  %v71 = vpack.c.b16 %v60, %v59
  %v72 = vpack.c.b16 %v62, %v61
  %v73 = vpack.c.b16 %v64, %v63
  %v74 = vpack.c.b16 %v66, %v65
  %v79 = vunpack.c.l.b16 %v31
  %v80 = vunpack.c.l.b16 %v32
  %v81 = vunpack.c.l.b16 %v33
  %v82 = vunpack.c.l.b16 %v34
  %v83 = vpack.c.b16 %v80, %v79
  %v84 = vpack.c.b16 %v82, %v81
  %vm86 = vcmask 220160
  %v88 = vsel %vm86, %v67, 0
  %v91 = vsel %vm86, %v68, 0
  %v94 = vsel %vm86, %v69, 0
  %v97 = vsel %vm86, %v70, 0
  %v100 = vsel %vm86, %v71, 0
  %v103 = vsel %vm86, %v72, 0
  %v106 = vsel %vm86, %v73, 0
  %v109 = vsel %vm86, %v74, 0
  %vm111 = vcmask 1044480
  %vm112 = vcmask 1045504
  %v113 = vsel %vm111, 4294967295, 65535
  %v114 = vsel %vm112, %v113, 0
  %v116 = vand.u32 %v84, %v114
  %118 = vmatprep.subr.bf16.mxu0 0
  %119 = vmatpush1.bf16.msra.mxu0 0
  %120 = vmatprep.subr.bf16.mxu0 0
  %121 = vmatpush1.bf16.msra.mxu0 0
  %122 = vmatprep.subr.bf16.mxu0 0
  %123 = vmatpush1.bf16.msra.mxu0 0
  %124 = vmatprep.subr.bf16.mxu0 0
  %125 = vmatpush1.bf16.msra.mxu0 0
  %126 = vmatprep.subr.bf16.mxu0 0
  %127 = vmatpush1.bf16.msra.mxu0 0
  %128 = vmatprep.subr.bf16.mxu0 0
  %129 = vmatpush1.bf16.msra.mxu0 0
  %130 = vmatprep.subr.bf16.mxu0 0
  %131 = vmatpush1.bf16.msra.mxu0 %v116
  %132 = vmatprep.subr.bf16.mxu0 0
  %133 = vmatpush1.bf16.msra.mxu0 %v83
  %134 = vmatprep.subr.bf16.mxu0 0
  %135 = vmatpush2.bf16.msra.mxu0 0
  %136 = vmatprep.subr.bf16.mxu0 0
  %137 = vmatpush2.bf16.msra.mxu0 0
  %138 = vmatprep.subr.bf16.mxu0 0
  %139 = vmatpush2.bf16.msra.mxu0 0
  %140 = vmatprep.subr.bf16.mxu0 0
  %141 = vmatpush2.bf16.msra.mxu0 0
  %142 = vmatprep.subr.bf16.mxu0 0
  %143 = vmatpush2.bf16.msra.mxu0 0
  %144 = vmatprep.subr.bf16.mxu0 0
  %145 = vmatpush2.bf16.msra.mxu0 0
  %146 = vmatprep.subr.bf16.mxu0 0
  %147 = vmatpush2.bf16.msra.mxu0 0
  %148 = vmatprep.subr.bf16.mxu0 0
  %149 = vmatpush2.bf16.msra.mxu0 0
  %150 = vmatprep.mubr.bf16.mxu0 0
  %151 = vmatmul.mubr.bf16.gmra.mxu0 %v88
  %v152 = vpop.f32.mrf.mxu0
  %v153 = vadd.f32 0.0, %v152
  %v154 = vpop.f32.mrf.mxu0
  %v155 = vpop.f32.mrf.mxu0
  %v156 = vadd.f32 0.0, %v155
  %v157 = vpop.f32.mrf.mxu0
  %158 = vmatprep.mubr.bf16.mxu0 0
  %159 = vmatmul.mubr.bf16.gmra.mxu0 %v91
  %v160 = vpop.f32.mrf.mxu0
  %v161 = vadd.f32 0.0, %v160
  %v162 = vpop.f32.mrf.mxu0
  %v163 = vpop.f32.mrf.mxu0
  %v164 = vadd.f32 0.0, %v163
  %v165 = vpop.f32.mrf.mxu0
  %166 = vmatprep.mubr.bf16.mxu0 0
  %167 = vmatmul.mubr.bf16.gmra.mxu0 %v94
  %v168 = vpop.f32.mrf.mxu0
  %v169 = vadd.f32 0.0, %v168
  %v170 = vpop.f32.mrf.mxu0
  %v171 = vpop.f32.mrf.mxu0
  %v172 = vadd.f32 0.0, %v171
  %v173 = vpop.f32.mrf.mxu0
  %174 = vmatprep.mubr.bf16.mxu0 0
  %175 = vmatmul.mubr.bf16.gmra.mxu0 %v97
  %v176 = vpop.f32.mrf.mxu0
  %v177 = vadd.f32 0.0, %v176
  %v178 = vpop.f32.mrf.mxu0
  %v179 = vpop.f32.mrf.mxu0
  %v180 = vadd.f32 0.0, %v179
  %v181 = vpop.f32.mrf.mxu0
  %182 = vmatprep.mubr.bf16.mxu0 0
  %183 = vmatmul.mubr.bf16.gmra.mxu0 %v100
  %v184 = vpop.f32.mrf.mxu0
  %v185 = vadd.f32 0.0, %v184
  %v186 = vpop.f32.mrf.mxu0
  %v187 = vpop.f32.mrf.mxu0
  %v188 = vadd.f32 0.0, %v187
  %v189 = vpop.f32.mrf.mxu0
  %190 = vmatprep.mubr.bf16.mxu0 0
  %191 = vmatmul.mubr.bf16.gmra.mxu0 %v103
  %v192 = vpop.f32.mrf.mxu0
  %v193 = vadd.f32 0.0, %v192
  %v194 = vpop.f32.mrf.mxu0
  %v195 = vpop.f32.mrf.mxu0
  %v196 = vadd.f32 0.0, %v195
  %v197 = vpop.f32.mrf.mxu0
  %198 = vmatprep.mubr.bf16.mxu0 0
  %199 = vmatmul.mubr.bf16.gmra.mxu0 %v106
  %v200 = vpop.f32.mrf.mxu0
  %v201 = vadd.f32 0.0, %v200
  %v202 = vpop.f32.mrf.mxu0
  %v203 = vpop.f32.mrf.mxu0
  %v204 = vadd.f32 0.0, %v203
  %v205 = vpop.f32.mrf.mxu0
  %206 = vmatprep.mubr.bf16.mxu0 0
  %207 = vmatmul.mubr.bf16.gmra.mxu0 %v109
  %v208 = vpop.f32.mrf.mxu0
  %v209 = vadd.f32 0.0, %v208
  %v210 = vpop.f32.mrf.mxu0
  %v211 = vpop.f32.mrf.mxu0
  %v212 = vadd.f32 0.0, %v211
  %v213 = vpop.f32.mrf.mxu0
  %214 = vdwg.mxu0
  %v215 = vpack.c.bf16 %v156, %v153
  %v216 = vpack.c.bf16 %v164, %v161
  %v217 = vpack.c.bf16 %v172, %v169
  %v218 = vpack.c.bf16 %v180, %v177
  %v219 = vpack.c.bf16 %v188, %v185
  %v220 = vpack.c.bf16 %v196, %v193
  %v221 = vpack.c.bf16 %v204, %v201
  %v222 = vpack.c.bf16 %v212, %v209
  %v231 = vunpack.c.l.b16 %v215
  %v232 = vunpack.c.h.b16 %v215
  %v233 = vunpack.c.l.b16 %v216
  %v234 = vunpack.c.h.b16 %v216
  %v235 = vunpack.c.l.b16 %v217
  %v236 = vunpack.c.h.b16 %v217
  %v237 = vunpack.c.l.b16 %v218
  %v238 = vunpack.c.h.b16 %v218
  %v239 = vunpack.c.l.b16 %v219
  %v240 = vunpack.c.h.b16 %v219
  %v241 = vunpack.c.l.b16 %v220
  %v242 = vunpack.c.h.b16 %v220
  %v243 = vunpack.c.l.b16 %v221
  %v244 = vunpack.c.h.b16 %v221
  %v245 = vunpack.c.l.b16 %v222
  %v246 = vunpack.c.h.b16 %v222
  %v247 = vpack.c.b16 %v231, %v231
  %v248 = vpack.c.b16 %v232, %v232
  %v249 = vpack.c.b16 %v233, %v233
  %v250 = vpack.c.b16 %v234, %v234
  %v251 = vpack.c.b16 %v235, %v235
  %v252 = vpack.c.b16 %v236, %v236
  %v253 = vpack.c.b16 %v237, %v237
  %v254 = vpack.c.b16 %v238, %v238
  %v255 = vpack.c.b16 %v239, %v239
  %v256 = vpack.c.b16 %v240, %v240
  %v257 = vpack.c.b16 %v241, %v241
  %v258 = vpack.c.b16 %v242, %v242
  %v259 = vpack.c.b16 %v243, %v243
  %v260 = vpack.c.b16 %v244, %v244
  %v261 = vpack.c.b16 %v245, %v245
  %v262 = vpack.c.b16 %v246, %v246
  %vm279 = vcmask 125952
  %280 = vst.msk [vmem:[%s2] sm:$0xf] %vm279, %v247
  %281 = vst.msk [vmem:[%s2 + $0x4] sm:$0xf] %vm279, %v248
  %282 = vst.msk [vmem:[%s2 + $0x8] sm:$0xf] %vm279, %v249
  %283 = vst.msk [vmem:[%s2 + $0xc] sm:$0xf] %vm279, %v250
  %284 = vst.msk [vmem:[%s2 + $0x10] sm:$0xf] %vm279, %v251
  %285 = vst.msk [vmem:[%s2 + $0x14] sm:$0xf] %vm279, %v252
  %286 = vst.msk [vmem:[%s2 + $0x18] sm:$0xf] %vm279, %v253
  %287 = vst.msk [vmem:[%s2 + $0x1c] sm:$0xf] %vm279, %v254
  %288 = vst.msk [vmem:[%s2 + $0x20] sm:$0xf] %vm279, %v255
  %289 = vst.msk [vmem:[%s2 + $0x24] sm:$0xf] %vm279, %v256
  %290 = vst.msk [vmem:[%s2 + $0x28] sm:$0xf] %vm279, %v257
  %291 = vst.msk [vmem:[%s2 + $0x2c] sm:$0xf] %vm279, %v258
  %292 = vst.msk [vmem:[%s2 + $0x30] sm:$0xf] %vm279, %v259
  %293 = vst.msk [vmem:[%s2 + $0x34] sm:$0xf] %vm279, %v260
  %294 = vst.msk [vmem:[%s2 + $0x38] sm:$0xf] %vm279, %v261
  %295 = vst.msk [vmem:[%s2 + $0x3c] sm:$0xf] %vm279, %v262
  %vm296 = vcmask 130048
  %v297 = vsel %vm296, %v153, 0.0
  %v298 = vsel %vm296, %v156, 0.0
  %v299 = vadd.f32 %v297, %v298
  %v300 = vsel %vm296, %v161, 0.0
  %v301 = vadd.f32 %v299, %v300
  %v302 = vsel %vm296, %v164, 0.0
  %v303 = vadd.f32 %v301, %v302
  %v304 = vsel %vm296, %v169, 0.0
  %v305 = vadd.f32 %v303, %v304
  %v306 = vsel %vm296, %v172, 0.0
  %v307 = vadd.f32 %v305, %v306
  %v308 = vsel %vm296, %v177, 0.0
  %v309 = vadd.f32 %v307, %v308
  %v310 = vsel %vm296, %v180, 0.0
  %v311 = vadd.f32 %v309, %v310
  %v312 = vsel %vm296, %v185, 0.0
  %v313 = vadd.f32 %v311, %v312
  %v314 = vsel %vm296, %v188, 0.0
  %v315 = vadd.f32 %v313, %v314
  %v316 = vsel %vm296, %v193, 0.0
  %v317 = vadd.f32 %v315, %v316
  %v318 = vsel %vm296, %v196, 0.0
  %v319 = vadd.f32 %v317, %v318
  %v320 = vsel %vm296, %v201, 0.0
  %v321 = vadd.f32 %v319, %v320
  %v322 = vsel %vm296, %v204, 0.0
  %v323 = vadd.f32 %v321, %v322
  %v324 = vsel %vm296, %v209, 0.0
  %v325 = vadd.f32 %v323, %v324
  %v326 = vsel %vm296, %v212, 0.0
  %v327 = vadd.f32 %v325, %v326
  %v328 = vrot.slane %v327, 4
  %v329 = vadd.f32 %v327, %v328
  %v330 = vrot.slane %v329, 2
  %v331 = vadd.f32 %v329, %v330
  %v332 = vrot.slane %v331, 1
  %v333 = vadd.f32 %v331, %v332
  %v334 = vmul.f32 %v153, %v153
  %v335 = vmul.f32 %v156, %v156
  %v336 = vmul.f32 %v161, %v161
  %v337 = vmul.f32 %v164, %v164
  %v338 = vmul.f32 %v169, %v169
  %v339 = vmul.f32 %v172, %v172
  %v340 = vmul.f32 %v177, %v177
  %v341 = vmul.f32 %v180, %v180
  %v342 = vmul.f32 %v185, %v185
  %v343 = vmul.f32 %v188, %v188
  %v344 = vmul.f32 %v193, %v193
  %v345 = vmul.f32 %v196, %v196
  %v346 = vmul.f32 %v201, %v201
  %v347 = vmul.f32 %v204, %v204
  %v348 = vmul.f32 %v209, %v209
  %v349 = vmul.f32 %v212, %v212
  %v350 = vsel %vm296, %v334, 0.0
  %v351 = vsel %vm296, %v335, 0.0
  %v352 = vadd.f32 %v350, %v351
  %v353 = vsel %vm296, %v336, 0.0
  %v354 = vadd.f32 %v352, %v353
  %v355 = vsel %vm296, %v337, 0.0
  %v356 = vadd.f32 %v354, %v355
  %v357 = vsel %vm296, %v338, 0.0
  %v358 = vadd.f32 %v356, %v357
  %v359 = vsel %vm296, %v339, 0.0
  %v360 = vadd.f32 %v358, %v359
  %v361 = vsel %vm296, %v340, 0.0
  %v362 = vadd.f32 %v360, %v361
  %v363 = vsel %vm296, %v341, 0.0
  %v364 = vadd.f32 %v362, %v363
  %v365 = vsel %vm296, %v342, 0.0
  %v366 = vadd.f32 %v364, %v365
  %v367 = vsel %vm296, %v343, 0.0
  %v368 = vadd.f32 %v366, %v367
  %v369 = vsel %vm296, %v344, 0.0
  %v370 = vadd.f32 %v368, %v369
  %v371 = vsel %vm296, %v345, 0.0
  %v372 = vadd.f32 %v370, %v371
  %v373 = vsel %vm296, %v346, 0.0
  %v374 = vadd.f32 %v372, %v373
  %v375 = vsel %vm296, %v347, 0.0
  %v376 = vadd.f32 %v374, %v375
  %v377 = vsel %vm296, %v348, 0.0
  %v378 = vadd.f32 %v376, %v377
  %v379 = vsel %vm296, %v349, 0.0
  %v380 = vadd.f32 %v378, %v379
  %v381 = vrot.slane %v380, 4
  %v382 = vadd.f32 %v380, %v381
  %v383 = vrot.slane %v382, 2
  %v384 = vadd.f32 %v382, %v383
  %v385 = vrot.slane %v384, 1
  %v386 = vadd.f32 %v384, %v385
  %vm387 = vcmask 122880
  %388 = vst.msk [vmem:[%s3] sm:$0x1] %vm387, %v333
  %389 = vst.msk [vmem:[%s4] sm:$0x1] %vm387, %v386
  // Predicated region
  $region10: #{patch_embedding_forward.4} parent=0 // pred_check
    _
  $region11: #{patch_embedding_forward.4} parent=0 // pred_check_branch
    %391 = sbr.rel (0) target = $region13
  $region12: #{patch_embedding_forward.4} parent=0 // pred_region
    _
  $region13: #{patch_embedding_forward.4} parent=0 // pred_fallthru
    _
  // Predicated region
  $region14: #{patch_embedding_forward.4} parent=0 // pred_check
    _
  $region15: #{patch_embedding_forward.4} parent=0 // pred_check_branch
    %393 = sbr.rel (0) target = $region17
  $region16: #{patch_embedding_forward.4} parent=0 // pred_region
    _
  $region17: #{patch_embedding_forward.4} parent=0 // pred_fallthru
    _
  // Predicated region
  $region18: #{patch_embedding_forward.4} parent=0 // pred_check
    _
  $region19: #{patch_embedding_forward.4} parent=0 // pred_check_branch
    %395 = sbr.rel (0) target = $region21
  $region20: #{patch_embedding_forward.4} parent=0 // pred_region
    _
  $region21: #{patch_embedding_forward.4} parent=0 // pred_fallthru
    _
  // Predicated region
  $region22: #{patch_embedding_forward.4} parent=0 // pred_check
    _
  $region23: #{patch_embedding_forward.4} parent=0 // pred_check_branch
    %397 = sbr.rel (0) target = $region25
  $region24: #{patch_embedding_forward.4} parent=0 // pred_region
    _
  $region25: #{patch_embedding_forward.4} parent=0 // pred_fallthru
    _
  // Predicated region
  $region26: #{patch_embedding_forward.4} parent=0 // pred_check
    _
  $region27: #{patch_embedding_forward.4} parent=0 // pred_check_branch
    %399 = sbr.rel (0) target = $region29
  $region28: #{patch_embedding_forward.4} parent=0 // pred_region
    _
  $region29: #{patch_embedding_forward.4} parent=0 // pred_fallthru
    _
  // Predicated region
  $region30: #{patch_embedding_forward.4} parent=0 // pred_check
    _
  $region31: #{patch_embedding_forward.4} parent=0 // pred_check_branch
    %401 = sbr.rel (0) target = $region33
  $region32: #{patch_embedding_forward.4} parent=0 // pred_region
    _
  $region33: #{patch_embedding_forward.4} parent=0 // pred_fallthru
    _

// kernel: tile.33
$region0: #{tile.33}
  #allocation0 [shape = 's32[1]{0}', space=sflag, size = 0x4, scoped, tag = 'scoped memory for tile.33']
  %s0 = inlined_call_operand.vmem [shape: f32[32], index: 0, kind: input, shape index: {}]
  %s1 = inlined_call_operand.vmem [shape: f32[4,32], index: 1, kind: output, shape index: {}]
  // Predicated region
  $region2: #{tile.33} parent=0 // pred_check
    _
  $region3: #{tile.33} parent=0 // pred_check_branch
    %3 = sbr.rel (0) target = $region5
  $region4: #{tile.33} parent=0 // pred_region
    _
  $region5: #{tile.33} parent=0 // pred_fallthru
    _
  %v4 = vld [vmem:[%s0] ss:$0 sm:$0xff]
  %5 = vst [vmem:[%s1] sm:$0xf] %v4

// kernel: tile.34
$region0: #{tile.34}
  %s0 = inlined_call_operand.vmem [shape: f32[4,32], index: 0, kind: input, shape index: {}]
  %s1 = inlined_call_operand.vmem [shape: f32[1,128], index: 1, kind: output, shape index: {}]
  $region1: #{tile.34} parent=0
    #allocation0 [shape = 'u8[4096]{0}', space=vmem, size = 0x1000, scoped, tag = 'scoped mem for output reshape']
    #allocation1 [shape = 'u8[4096]{0}', space=vmem, size = 0x1000, scoped, tag = 'scoped mem for input reshape']
    %s3 = sshll.u32 1, 4
    %s4 = ssub.s32 %s3, 1
    %v5 = vld [vmem:[%s0] sm:%s4]
    %6 = vst [vmem:[#allocation1] sm:%s4] %v5
    %v7 = vld [vmem:[#allocation1] sm:$0x1]
    %vm8 = vcmask 261120
    %9 = vst.msk [vmem:[#allocation0] sm:$0x1] %vm8, %v7
    %s10 = scalar_lea.vmem [#allocation1], 3
    %v11 = vld [vmem:[%s10] sm:$0x1]
    %12 = vrot.lane.b32.xlu0 %v11, 96
    %v13 = vpop.permute.xlu0 %12
    %vm14 = vcmask 1048320
    %15 = vst.msk [vmem:[#allocation0] sm:$0x1] %vm14, %v13
    %s16 = scalar_lea.vmem [#allocation1], 2
    %v17 = vld [vmem:[%s16] sm:$0x1]
    %18 = vrot.lane.b32.xlu0 %v17, 64
    %v19 = vpop.permute.xlu0 %18
    %vm20 = vcmask 785920
    %21 = vst.msk [vmem:[#allocation0] sm:$0x1] %vm20, %v19
    %s22 = scalar_lea.vmem [#allocation1], 1
    %v23 = vld [vmem:[%s22] sm:$0x1]
    %24 = vrot.lane.b32.xlu0 %v23, 32
    %v25 = vpop.permute.xlu0 %24
    %vm26 = vcmask 523520
    %27 = vst.msk [vmem:[#allocation0] sm:$0x1] %vm26, %v25
    %s29 = sshll.u32 1, 1
    %s30 = ssub.s32 %s29, 1
    %v32 = vld [vmem:[#allocation0] sm:%s30]
    %s33 = sshll.u32 1, 1
    %s34 = ssub.s32 %s33, 1
    %35 = vst [vmem:[%s1] sm:%s34] %v32

// kernel: patch_embedding_forward.6
$region0: #{patch_embedding_forward.6}
  #allocation0 [shape = 'u32[]', space=smem, size = 0x4, offset = 0x4, fixed_abs, tag = 'smem constant byte address 0x4 - core index']
  #allocation1 [shape = 'u32[144,128]{1,0:T(1,128)}', space=vmem, size = 0x12000, scoped, tag = 'internal scratch']
  %s0 = inlined_call_operand.vmem [shape: bf16[32,144], index: 0, kind: input, shape index: {}]
  %s1 = inlined_call_operand.vmem [shape: bf16[144,32], index: 1, kind: input, shape index: {}]
  %s2 = inlined_call_operand.vmem [shape: bf16[32,32], index: 2, kind: output, shape index: {0}]
  %s3 = inlined_call_operand.vmem [shape: f32[1,1,32], index: 3, kind: output, shape index: {1}]
  %s4 = inlined_call_operand.vmem [shape: f32[1,1,32], index: 4, kind: output, shape index: {2}]
  %5 = xla_tuple %s2, %s3, %s4
  %s6 = sld [smem:[#allocation0]]
  $region34: #{patch_embedding_forward.6} parent=0
    _
  %s8 = ssub.s32 1, %s6
  %s9 = scalar_select 0, %s8, %s6
  // Predicated region
  $region2: #{patch_embedding_forward.6} parent=0 // pred_check
    _
  $region3: #{patch_embedding_forward.6} parent=0 // pred_check_branch
    %11 = sbr.rel (0) target = $region5
  $region4: #{patch_embedding_forward.6} parent=0 // pred_region
    _
  $region5: #{patch_embedding_forward.6} parent=0 // pred_fallthru
    _
  // Predicated region
  $region6: #{patch_embedding_forward.6} parent=0 // pred_check
    _
  $region7: #{patch_embedding_forward.6} parent=0 // pred_check_branch
    %13 = sbr.rel (0) target = $region9
  $region8: #{patch_embedding_forward.6} parent=0 // pred_region
    _
  $region9: #{patch_embedding_forward.6} parent=0 // pred_fallthru
    _
  %v15 = vld [vmem:[%s0] sm:$0xff]
  %v16 = vld [vmem:[%s0 + $0x8] sm:$0xff]
  %v17 = vld [vmem:[%s0 + $0x10] sm:$0xff]
  %v18 = vld [vmem:[%s0 + $0x18] sm:$0xff]
  %v19 = vld [vmem:[%s1] sm:$0xf]
  %v20 = vld [vmem:[%s1 + $0x4] sm:$0xf]
  %v21 = vld [vmem:[%s1 + $0x8] sm:$0xf]
  %v22 = vld [vmem:[%s1 + $0xc] sm:$0xf]
  %v23 = vld [vmem:[%s1 + $0x10] sm:$0xf]
  %v24 = vld [vmem:[%s1 + $0x14] sm:$0xf]
  %v25 = vld [vmem:[%s1 + $0x18] sm:$0xf]
  %v26 = vld [vmem:[%s1 + $0x1c] sm:$0xf]
  %v27 = vld [vmem:[%s1 + $0x20] sm:$0xf]
  %v28 = vld [vmem:[%s1 + $0x24] sm:$0xf]
  %v29 = vld [vmem:[%s1 + $0x28] sm:$0xf]
  %v30 = vld [vmem:[%s1 + $0x2c] sm:$0xf]
  %v31 = vld [vmem:[%s1 + $0x30] sm:$0xf]
  %v32 = vld [vmem:[%s1 + $0x34] sm:$0xf]
  %v33 = vld [vmem:[%s1 + $0x38] sm:$0xf]
  %v34 = vld [vmem:[%s1 + $0x3c] sm:$0xf]
  %v35 = vld [vmem:[%s1 + $0x40] sm:$0xf]
  %v36 = vld [vmem:[%s1 + $0x44] sm:$0xf]
  %v41 = vunpack.c.l.b16 %v15
  %v42 = vunpack.c.h.b16 %v15
  %v43 = vunpack.c.l.b16 %v16
  %v44 = vunpack.c.h.b16 %v16
  %v45 = vunpack.c.l.b16 %v17
  %v46 = vunpack.c.h.b16 %v17
  %v47 = vunpack.c.l.b16 %v18
  %v48 = vunpack.c.h.b16 %v18
  %v49 = vpack.c.b16 %v43, %v41
  %v50 = vpack.c.b16 %v44, %v42
  %v51 = vpack.c.b16 %v47, %v45
  %v52 = vpack.c.b16 %v48, %v46
  %v73 = vunpack.c.l.b16 %v19
  %v74 = vunpack.c.l.b16 %v20
  %v75 = vunpack.c.l.b16 %v21
  %v76 = vunpack.c.l.b16 %v22
  %v77 = vunpack.c.l.b16 %v23
  %v78 = vunpack.c.l.b16 %v24
  %v79 = vunpack.c.l.b16 %v25
  %v80 = vunpack.c.l.b16 %v26
  %v81 = vunpack.c.l.b16 %v27
  %v82 = vunpack.c.l.b16 %v28
  %v83 = vunpack.c.l.b16 %v29
  %v84 = vunpack.c.l.b16 %v30
  %v85 = vunpack.c.l.b16 %v31
  %v86 = vunpack.c.l.b16 %v32
  %v87 = vunpack.c.l.b16 %v33
  %v88 = vunpack.c.l.b16 %v34
  %v89 = vunpack.c.l.b16 %v35
  %v90 = vunpack.c.l.b16 %v36
  %v91 = vpack.c.b16 %v74, %v73
  %v92 = vpack.c.b16 %v76, %v75
  %v93 = vpack.c.b16 %v78, %v77
  %v94 = vpack.c.b16 %v80, %v79
  %v95 = vpack.c.b16 %v82, %v81
  %v96 = vpack.c.b16 %v84, %v83
  %v97 = vpack.c.b16 %v86, %v85
  %v98 = vpack.c.b16 %v88, %v87
  %v99 = vpack.c.b16 %v90, %v89
  %vm109 = vcmask 130048
  %v111 = vsel %vm109, %v50, 0
  %v114 = vsel %vm109, %v52, 0
  %116 = vmatprep.subr.bf16.mxu0 0
  %117 = vmatpush1.bf16.msra.mxu0 %v98
  %118 = vmatprep.subr.bf16.mxu0 0
  %119 = vmatpush1.bf16.msra.mxu0 %v97
  %120 = vmatprep.subr.bf16.mxu0 0
  %121 = vmatpush1.bf16.msra.mxu0 %v96
  %122 = vmatprep.subr.bf16.mxu0 0
  %123 = vmatpush1.bf16.msra.mxu0 %v95
  %124 = vmatprep.subr.bf16.mxu0 0
  %125 = vmatpush1.bf16.msra.mxu0 %v94
  %126 = vmatprep.subr.bf16.mxu0 0
  %127 = vmatpush1.bf16.msra.mxu0 %v93
  %128 = vmatprep.subr.bf16.mxu0 0
  %129 = vmatpush1.bf16.msra.mxu0 %v92
  %130 = vmatprep.subr.bf16.mxu0 0
  %131 = vmatpush1.bf16.msra.mxu0 %v91
  %132 = vmatprep.subr.bf16.mxu0 0
  %133 = vmatpush2.bf16.msra.mxu0 0
  %134 = vmatprep.subr.bf16.mxu0 0
  %135 = vmatpush2.bf16.msra.mxu0 0
  %136 = vmatprep.subr.bf16.mxu0 0
  %137 = vmatpush2.bf16.msra.mxu0 0
  %138 = vmatprep.subr.bf16.mxu0 0
  %139 = vmatpush2.bf16.msra.mxu0 0
  %140 = vmatprep.subr.bf16.mxu0 0
  %141 = vmatpush2.bf16.msra.mxu0 0
  %142 = vmatprep.subr.bf16.mxu0 0
  %143 = vmatpush2.bf16.msra.mxu0 0
  %144 = vmatprep.subr.bf16.mxu0 0
  %145 = vmatpush2.bf16.msra.mxu0 0
  %146 = vmatprep.subr.bf16.mxu0 0
  %147 = vmatpush2.bf16.msra.mxu0 %v99
  %148 = vmatprep.mubr.bf16.mxu0 %v111
  %149 = vmatmul.mubr.bf16.gmra.mxu0 %v49
  %v150 = vpop.f32.mrf.mxu0
  %v151 = vadd.f32 0.0, %v150
  %v152 = vpop.f32.mrf.mxu0
  %v153 = vpop.f32.mrf.mxu0
  %v154 = vadd.f32 0.0, %v153
  %v155 = vpop.f32.mrf.mxu0
  %156 = vmatprep.mubr.bf16.mxu0 %v114
  %157 = vmatmul.mubr.bf16.gmra.mxu0 %v51
  %v158 = vpop.f32.mrf.mxu0
  %v159 = vadd.f32 0.0, %v158
  %v160 = vpop.f32.mrf.mxu0
  %v161 = vpop.f32.mrf.mxu0
  %v162 = vadd.f32 0.0, %v161
  %v163 = vpop.f32.mrf.mxu0
  %164 = vdwg.mxu0
  %v165 = vpack.c.bf16 %v154, %v151
  %v166 = vpack.c.bf16 %v162, %v159
  %v169 = vunpack.c.l.b16 %v165
  %v170 = vunpack.c.h.b16 %v165
  %v171 = vunpack.c.l.b16 %v166
  %v172 = vunpack.c.h.b16 %v166
  %v173 = vpack.c.b16 %v169, %v169
  %v174 = vpack.c.b16 %v170, %v170
  %v175 = vpack.c.b16 %v171, %v171
  %v176 = vpack.c.b16 %v172, %v172
  %vm181 = vcmask 257024
  %182 = vst.msk [vmem:[%s2] sm:$0xf] %vm181, %v173
  %183 = vst.msk [vmem:[%s2 + $0x4] sm:$0xf] %vm181, %v174
  %184 = vst.msk [vmem:[%s2 + $0x8] sm:$0xf] %vm181, %v175
  %185 = vst.msk [vmem:[%s2 + $0xc] sm:$0xf] %vm181, %v176
  %vm186 = vcmask 261120
  %v187 = vsel %vm186, %v151, 0.0
  %v188 = vsel %vm186, %v154, 0.0
  %v189 = vadd.f32 %v187, %v188
  %v190 = vsel %vm186, %v159, 0.0
  %v191 = vadd.f32 %v189, %v190
  %v192 = vsel %vm186, %v162, 0.0
  %v193 = vadd.f32 %v191, %v192
  %v194 = vrot.slane %v193, 4
  %v195 = vadd.f32 %v193, %v194
  %v196 = vrot.slane %v195, 2
  %v197 = vadd.f32 %v195, %v196
  %v198 = vrot.slane %v197, 1
  %v199 = vadd.f32 %v197, %v198
  %v200 = vmul.f32 %v151, %v151
  %v201 = vmul.f32 %v154, %v154
  %v202 = vmul.f32 %v159, %v159
  %v203 = vmul.f32 %v162, %v162
  %v204 = vsel %vm186, %v200, 0.0
  %v205 = vsel %vm186, %v201, 0.0
  %v206 = vadd.f32 %v204, %v205
  %v207 = vsel %vm186, %v202, 0.0
  %v208 = vadd.f32 %v206, %v207
  %v209 = vsel %vm186, %v203, 0.0
  %v210 = vadd.f32 %v208, %v209
  %v211 = vrot.slane %v210, 4
  %v212 = vadd.f32 %v210, %v211
  %v213 = vrot.slane %v212, 2
  %v214 = vadd.f32 %v212, %v213
  %v215 = vrot.slane %v214, 1
  %v216 = vadd.f32 %v214, %v215
  %vm217 = vcmask 253952
  %218 = vst.msk [vmem:[%s3] sm:$0x1] %vm217, %v199
  %219 = vst.msk [vmem:[%s4] sm:$0x1] %vm217, %v216
  // Predicated region
  $region10: #{patch_embedding_forward.6} parent=0 // pred_check
    _
  $region11: #{patch_embedding_forward.6} parent=0 // pred_check_branch
    %221 = sbr.rel (0) target = $region13
  $region12: #{patch_embedding_forward.6} parent=0 // pred_region
    _
  $region13: #{patch_embedding_forward.6} parent=0 // pred_fallthru
    _
  // Predicated region
  $region14: #{patch_embedding_forward.6} parent=0 // pred_check
    _
  $region15: #{patch_embedding_forward.6} parent=0 // pred_check_branch
    %223 = sbr.rel (0) target = $region17
  $region16: #{patch_embedding_forward.6} parent=0 // pred_region
    _
  $region17: #{patch_embedding_forward.6} parent=0 // pred_fallthru
    _
  // Predicated region
  $region18: #{patch_embedding_forward.6} parent=0 // pred_check
    _
  $region19: #{patch_embedding_forward.6} parent=0 // pred_check_branch
    %225 = sbr.rel (0) target = $region21
  $region20: #{patch_embedding_forward.6} parent=0 // pred_region
    _
  $region21: #{patch_embedding_forward.6} parent=0 // pred_fallthru
    _
  // Predicated region
  $region22: #{patch_embedding_forward.6} parent=0 // pred_check
    _
  $region23: #{patch_embedding_forward.6} parent=0 // pred_check_branch
    %227 = sbr.rel (0) target = $region25
  $region24: #{patch_embedding_forward.6} parent=0 // pred_region
    _
  $region25: #{patch_embedding_forward.6} parent=0 // pred_fallthru
    _
  // Predicated region
  $region26: #{patch_embedding_forward.6} parent=0 // pred_check
    _
  $region27: #{patch_embedding_forward.6} parent=0 // pred_check_branch
    %229 = sbr.rel (0) target = $region29
  $region28: #{patch_embedding_forward.6} parent=0 // pred_region
    _
  $region29: #{patch_embedding_forward.6} parent=0 // pred_fallthru
    _
  // Predicated region
  $region30: #{patch_embedding_forward.6} parent=0 // pred_check
    _
  $region31: #{patch_embedding_forward.6} parent=0 // pred_check_branch
    %231 = sbr.rel (0) target = $region33
  $region32: #{patch_embedding_forward.6} parent=0 // pred_region
    _
  $region33: #{patch_embedding_forward.6} parent=0 // pred_fallthru
    _

// kernel: patch_embedding_forward.7
$region0: #{patch_embedding_forward.7}
  #allocation0 [shape = 'u32[]', space=smem, size = 0x4, offset = 0x4, fixed_abs, tag = 'smem constant byte address 0x4 - core index']
  #allocation1 [shape = 'u32[144,128]{1,0:T(1,128)}', space=vmem, size = 0x12000, scoped, tag = 'internal scratch']
  %s0 = inlined_call_operand.vmem [shape: bf16[8,128], index: 0, kind: input, shape index: {}]
  %s1 = inlined_call_operand.vmem [shape: f32[1,128], index: 1, kind: input, shape index: {}]
  %s2 = inlined_call_operand.vmem [shape: f32[1,128], index: 2, kind: input, shape index: {}]
  %s3 = inlined_call_operand.vmem [shape: f32[8,128], index: 3, kind: output, shape index: {}]
  %s4 = sld [smem:[#allocation0]]
  $region22: #{patch_embedding_forward.7} parent=0
    _
  %s6 = ssub.s32 1, %s4
  %s7 = scalar_select 0, %s6, %s4
  // Predicated region
  $region2: #{patch_embedding_forward.7} parent=0 // pred_check
    _
  $region3: #{patch_embedding_forward.7} parent=0 // pred_check_branch
    %9 = sbr.rel (0) target = $region5
  $region4: #{patch_embedding_forward.7} parent=0 // pred_region
    _
  $region5: #{patch_embedding_forward.7} parent=0 // pred_fallthru
    _
  // Predicated region
  $region6: #{patch_embedding_forward.7} parent=0 // pred_check
    _
  $region7: #{patch_embedding_forward.7} parent=0 // pred_check_branch
    %11 = sbr.rel (0) target = $region9
  $region8: #{patch_embedding_forward.7} parent=0 // pred_region
    _
  $region9: #{patch_embedding_forward.7} parent=0 // pred_fallthru
    _
  // Predicated region
  $region10: #{patch_embedding_forward.7} parent=0 // pred_check
    _
  $region11: #{patch_embedding_forward.7} parent=0 // pred_check_branch
    %13 = sbr.rel (0) target = $region13
  $region12: #{patch_embedding_forward.7} parent=0 // pred_region
    _
  $region13: #{patch_embedding_forward.7} parent=0 // pred_fallthru
    _
  %v14 = vld [vmem:[%s0] sm:$0xf]
  %v15 = vunpack.c.l.bf16 %v14
  %v16 = vld [vmem:[%s1] sm:$0x1]
  %v18 = vlaneseq
  %v19 = vshrl.u32 %v18, 7
  %v20 = vsub.s32 0, %v19
  %v21 = vrot.slane %v16, %v20
  %v23 = vmul.f32 %v15, %v21
  %v24 = vld [vmem:[%s2] sm:$0x1]
  %v26 = vlaneseq
  %v27 = vshrl.u32 %v26, 7
  %v28 = vsub.s32 0, %v27
  %v29 = vrot.slane %v24, %v28
  %v31 = vadd.f32 %v23, %v29
  %32 = vst [vmem:[%s3] sm:$0xff] %v31
  // Predicated region
  $region14: #{patch_embedding_forward.7} parent=0 // pred_check
    _
  $region15: #{patch_embedding_forward.7} parent=0 // pred_check_branch
    %34 = sbr.rel (0) target = $region17
  $region16: #{patch_embedding_forward.7} parent=0 // pred_region
    _
  $region17: #{patch_embedding_forward.7} parent=0 // pred_fallthru
    _
  // Predicated region
  $region18: #{patch_embedding_forward.7} parent=0 // pred_check
    _
  $region19: #{patch_embedding_forward.7} parent=0 // pred_check_branch
    %36 = sbr.rel (0) target = $region21
  $region20: #{patch_embedding_forward.7} parent=0 // pred_region
    _
  $region21: #{patch_embedding_forward.7} parent=0 // pred_fallthru
    _

</llo_original>
